<compile_context>
chip_gen: v6e
topology: v6e:2x2x1
jax: 0.10.0
libtpu: 0.0.40
codegen_flags: <defaults>
</compile_context>

<pallas_src>
import functools

import jax
import jax.numpy as jnp
from jax.experimental import pallas as pl
from jax.experimental.pallas import tpu as pltpu

_LANE = 128


def _var_kernel(win_ref, w_ref, c_ref, out_ref, *, p, n, out_len):
    """One grid step handles one lane-chunk of the packed (batch*channel) axis.

    win_ref : [p*N, BC]       rolling window, lag-major ((k, m) flattened)
    w_ref   : [N, p*N]        fused lag weights, already scaled by 1/p
    c_ref   : [N, 1]          bias
    out_ref : [out_len*N, BC] stacked predictions (step-major)
    """
    bc = win_ref.shape[-1]

    # Loop invariants hoisted out of the AR recurrence.
    w = w_ref[...]                                   # [N, p*N]
    c_b = jnp.broadcast_to(c_ref[...], (n, bc))      # [N, BC], broadcast once

    # Register-resident rolling window (p*N*BC f32 is tiny).
    x = win_ref[...].astype(jnp.float32)             # [p*N, BC]

    preds = []
    for i in range(out_len):
        # Single fused MXU contraction over all lags and all series:
        #   pred[n, bc] = sum_{k,m} (W[k,n,m]/p) * x[k*N+m, bc] + c[n]
        pred = jnp.dot(w, x, preferred_element_type=jnp.float32) + c_b
        preds.append(pred)

        # Roll the window: drop oldest lag, append prediction.  Pure vreg
        # relabel for the small p*N row count (no VMEM roll).
        if i + 1 < out_len:
            x = jnp.concatenate([x[n:], pred], axis=0) if p > 1 else pred

    # One fat lane-dense store instead of out_len small ones.
    stacked = preds[0] if out_len == 1 else jnp.concatenate(preds, axis=0)
    out_ref[...] = stacked.astype(out_ref.dtype)


def var_forward(history_data, weight, c, *, p, output_length):
    """history_data: [B, L, N, C] -> prediction [B, output_length, N, C]."""
    B, L, N, C = history_data.shape
    assert weight.shape == (p, N, N)
    assert c.shape == (N, 1)
    assert L >= p, "need at least p history steps"

    BC = B * C
    BC_pad = -(-BC // _LANE) * _LANE     # lane-align -> dense vregs, unmasked stores

    # ---- wrapper-side layout packing -----------------------------------
    # Only the last p steps are needed; pack them lane-dense as [p*N, B*C].
    win = history_data[:, L - p:, :, :]                        # [B, p, N, C]
    win = jnp.transpose(win, (1, 2, 0, 3)).reshape(p * N, BC)  # [(k,m), (b,c)]
    if BC_pad != BC:
        win = jnp.pad(win, ((0, 0), (0, BC_pad - BC)))
    win = win.astype(jnp.float32)

    # Fuse the p lag matmuls into one contraction; fold in the 1/p mean.
    w_fused = (jnp.transpose(weight, (1, 0, 2)).reshape(N, p * N)
               * (1.0 / p)).astype(jnp.float32)
    c_f = c.astype(jnp.float32)

    # Chunk the packed lane axis: keeps >=2 parallel grid steps at large B
    # for megacore, while staying a single fat step for small B.
    if BC_pad <= 512:
        bc_block = BC_pad
    elif BC_pad % 512 == 0:
        bc_block = 512
    elif BC_pad % 256 == 0:
        bc_block = 256
    else:
        bc_block = _LANE
    grid = (BC_pad // bc_block,)

    kernel = functools.partial(_var_kernel, p=p, n=N, out_len=output_length)

    out2d = pl.pallas_call(
        kernel,
        out_shape=jax.ShapeDtypeStruct((output_length * N, BC_pad),
                                       history_data.dtype),
        grid=grid,
        in_specs=[
            pl.BlockSpec((p * N, bc_block), lambda j: (0, j)),   # window chunk
            pl.BlockSpec((N, p * N), lambda j: (0, 0)),          # fused weights
            pl.BlockSpec((N, 1), lambda j: (0, 0)),              # bias
        ],
        out_specs=pl.BlockSpec((output_length * N, bc_block), lambda j: (0, j)),
        compiler_params=pltpu.CompilerParams(
            dimension_semantics=("parallel",)),
    )(win, w_fused, c_f)

    # Unpack back to [B, output_length, N, C].
    out = out2d[:, :BC].reshape(output_length, N, B, C)
    return jnp.transpose(out, (2, 0, 1, 3))


def var_reference(history_data, weight, c, *, p, output_length):
    """Pure-JAX reference mirroring the PyTorch VAR forward exactly."""
    data_full = history_data.astype(jnp.float32)
    for _ in range(output_length):
        win = data_full[:, -p:, :, :]                          # [B, p, N, C]
        weighted = jnp.einsum("knm,bkmc->bknc", weight, win)   # [B, p, N, C]
        avg = jnp.mean(weighted, axis=1) + c[None, :, :]       # [B, N, C]
        data_full = jnp.concatenate([data_full, avg[:, None]], axis=1)
    return data_full[:, -output_length:, :, :].astype(history_data.dtype)


if __name__ == "__main__":
    # Small shapes consistent with the module; B chosen so B*C = 128 lanes
    # (lane-dense matmuls / stores).
    B, L, N, C = 32, 12, 8, 4
    p, output_length = 3, 4

    key = jax.random.PRNGKey(0)
    k_hist, k_w = jax.random.split(key)

    history = jax.random.normal(k_hist, (B, L, N, C), dtype=jnp.float32)

    # Deterministic init mimicking nn.init.xavier_uniform_ on (p, N, N).
    fan_in, fan_out = N * N, p * N
    bound = (6.0 / (fan_in + fan_out)) ** 0.5
    weight = jax.random.uniform(k_w, (p, N, N), minval=-bound, maxval=bound,
                                dtype=jnp.float32)
    c_param = jnp.zeros((N, 1), dtype=jnp.float32)   # nn.init.zeros_

    out = var_forward(history, weight, c_param, p=p, output_length=output_length)
    out = jax.block_until_ready(out)

    ref = var_reference(history, weight, c_param, p=p, output_length=output_length)
    assert out.shape == (B, output_length, N, C)
    assert jnp.allclose(out, ref, atol=2e-5, rtol=2e-5), "Pallas VAR mismatch vs reference"

    print("KERNEL_OK")
</pallas_src>

<mosaic_0001>
module attributes {stable_mosaic.version = 11 : i64} {
  func.func @_var_kernel(%arg0: i32, %arg1: memref<24x128xf32, #tpu.memory_space<vmem>>, %arg2: memref<8x24xf32, #tpu.memory_space<vmem>>, %arg3: memref<8x1xf32, #tpu.memory_space<vmem>>, %arg4: memref<32x128xf32, #tpu.memory_space<vmem>>) attributes {dimension_semantics = [#tpu.dimension_semantics<parallel>], iteration_bounds = array<i64: 1>, scalar_prefetch = 0 : i64, scratch_operands = 0 : i64, tpu.core_type = #tpu.core_type<tc>, window_params = [{transform_indices = @transform_0, window_bounds = array<i64: 24, 128>}, {pipeline_mode = #tpu.pipeline_mode<synchronous>, transform_indices = @transform_1, window_bounds = array<i64: 8, 24>}, {pipeline_mode = #tpu.pipeline_mode<synchronous>, transform_indices = @transform_2, window_bounds = array<i64: 8, 1>}, {transform_indices = @transform_3, window_bounds = array<i64: 32, 128>}]} {
    %c0 = arith.constant 0 : index
    %c0_0 = arith.constant 0 : index
    %0 = vector.load %arg2[%c0, %c0_0] : memref<8x24xf32, #tpu.memory_space<vmem>>, vector<8x24xf32>
    %c0_1 = arith.constant 0 : index
    %c0_2 = arith.constant 0 : index
    %1 = vector.load %arg3[%c0_1, %c0_2] : memref<8x1xf32, #tpu.memory_space<vmem>>, vector<8x1xf32>
    %2 = vector.shape_cast %1 : vector<8x1xf32> to vector<8x1xf32>
    %3 = vector.broadcast %2 : vector<8x1xf32> to vector<8x128xf32>
    %c0_3 = arith.constant 0 : index
    %c0_4 = arith.constant 0 : index
    %4 = vector.load %arg1[%c0_3, %c0_4] : memref<24x128xf32, #tpu.memory_space<vmem>>, vector<24x128xf32>
    %cst = arith.constant dense<0.000000e+00> : vector<8x128xf32>
    %5 = tpu.matmul %0, %4, %cst {dimension_numbers = #tpu.dot_dimension_numbers<[1], [0], [0], [1], [0, 0, 1, 1], [], []>} : vector<8x24xf32>, vector<24x128xf32>, vector<8x128xf32> -> vector<8x128xf32>
    %6 = arith.addf %5, %3 : vector<8x128xf32>
    %7 = vector.extract_strided_slice %4 {offsets = [8, 0], sizes = [16, 128], strides = [1, 1]} : vector<24x128xf32> to vector<16x128xf32>
    %8 = tpu.concatenate %7, %6 in 0 : vector<16x128xf32>, vector<8x128xf32> -> vector<24x128xf32>
    %cst_5 = arith.constant dense<0.000000e+00> : vector<8x128xf32>
    %9 = tpu.matmul %0, %8, %cst_5 {dimension_numbers = #tpu.dot_dimension_numbers<[1], [0], [0], [1], [0, 0, 1, 1], [], []>} : vector<8x24xf32>, vector<24x128xf32>, vector<8x128xf32> -> vector<8x128xf32>
    %10 = arith.addf %9, %3 : vector<8x128xf32>
    %11 = vector.extract_strided_slice %8 {offsets = [8, 0], sizes = [16, 128], strides = [1, 1]} : vector<24x128xf32> to vector<16x128xf32>
    %12 = tpu.concatenate %11, %10 in 0 : vector<16x128xf32>, vector<8x128xf32> -> vector<24x128xf32>
    %cst_6 = arith.constant dense<0.000000e+00> : vector<8x128xf32>
    %13 = tpu.matmul %0, %12, %cst_6 {dimension_numbers = #tpu.dot_dimension_numbers<[1], [0], [0], [1], [0, 0, 1, 1], [], []>} : vector<8x24xf32>, vector<24x128xf32>, vector<8x128xf32> -> vector<8x128xf32>
    %14 = arith.addf %13, %3 : vector<8x128xf32>
    %15 = vector.extract_strided_slice %12 {offsets = [8, 0], sizes = [16, 128], strides = [1, 1]} : vector<24x128xf32> to vector<16x128xf32>
    %16 = tpu.concatenate %15, %14 in 0 : vector<16x128xf32>, vector<8x128xf32> -> vector<24x128xf32>
    %cst_7 = arith.constant dense<0.000000e+00> : vector<8x128xf32>
    %17 = tpu.matmul %0, %16, %cst_7 {dimension_numbers = #tpu.dot_dimension_numbers<[1], [0], [0], [1], [0, 0, 1, 1], [], []>} : vector<8x24xf32>, vector<24x128xf32>, vector<8x128xf32> -> vector<8x128xf32>
    %18 = arith.addf %17, %3 : vector<8x128xf32>
    %19 = tpu.concatenate %6, %10, %14, %18 in 0 : vector<8x128xf32>, vector<8x128xf32>, vector<8x128xf32>, vector<8x128xf32> -> vector<32x128xf32>
    %c0_8 = arith.constant 0 : index
    %c0_9 = arith.constant 0 : index
    %20 = vector.load %arg4[%c0_8, %c0_9] : memref<32x128xf32, #tpu.memory_space<vmem>>, vector<32x128xf32>
    tpu.vector_store %arg4[%c0_8, %c0_9], %19 {strides = array<i32>} : memref<32x128xf32, #tpu.memory_space<vmem>>, vector<32x128xf32>,
    return
  }
  func.func @transform_0(%arg0: i32) -> (i32, i32) {
    %c0_i32 = arith.constant 0 : i32
    %c0_i32_0 = arith.constant 0 : i32
    return %c0_i32, %arg0 : i32, i32
  }
  func.func @transform_1(%arg0: i32) -> (i32, i32) {
    %c0_i32 = arith.constant 0 : i32
    %c0_i32_0 = arith.constant 0 : i32
    %c0_i32_1 = arith.constant 0 : i32
    return %c0_i32, %c0_i32_0 : i32, i32
  }
  func.func @transform_2(%arg0: i32) -> (i32, i32) {
    %c0_i32 = arith.constant 0 : i32
    %c0_i32_0 = arith.constant 0 : i32
    %c0_i32_1 = arith.constant 0 : i32
    return %c0_i32, %c0_i32_0 : i32, i32
  }
  func.func @transform_3(%arg0: i32) -> (i32, i32) {
    %c0_i32 = arith.constant 0 : i32
    %c0_i32_0 = arith.constant 0 : i32
    return %c0_i32, %arg0 : i32, i32
  }
}

</mosaic_0001>

<llo_original>
// kernel: tpu_custom_call.1
$region0: #{tpu_custom_call.1}
  #allocation0 [shape = 'u32[]', space=smem, size = 0x4, offset = 0x4, fixed_abs, tag = 'smem constant byte address 0x4 - core index']
  #allocation1 [shape = 'u32[144,128]{1,0:T(1,128)}', space=vmem, size = 0x12000, scoped, tag = 'internal scratch']
  %s0 = inlined_call_operand.hbm [shape: f32[24,128], index: 0, kind: input, shape index: {}]
  %s1 = inlined_call_operand.vmem [shape: f32[8,24], index: 1, kind: input, shape index: {}]
  %s2 = inlined_call_operand.vmem [shape: f32[8,1], index: 2, kind: input, shape index: {}]
  %s3 = inlined_call_operand.hbm [shape: f32[32,128], index: 3, kind: output, shape index: {}]
  %s4 = sld [smem:[#allocation0]]
  $region26: #{tpu_custom_call.1} parent=0
    _
  %s6 = ssub.s32 1, %s4
  %s7 = scalar_select 0, %s6, %s4
  $region1: #{tpu_custom_call.1} parent=0
    #allocation2 [shape = 'u8[12288]{0}', space=vmem, size = 0x3000, scoped, tag = 'input window, operand 0, single buffered']
    #allocation3 [shape = 's32[1]{0}', space=sflag, size = 0x4, scoped, tag = 'scoped memory for tpu_custom_call.1']
    #allocation4 [shape = 's32[1]{0}', space=sflag, size = 0x4, scoped, tag = 'scoped memory for tpu_custom_call.1']
    #allocation5 [shape = 'u8[16384]{0}', space=vmem, size = 0x4000, scoped, tag = 'output window, operand 0, single buffered']
    %8 = vsyncpa [#allocation3], 0
    %9 = vsyncpa [#allocation4], 0
    // Predicated region
    $region2: #{tpu_custom_call.1} parent=1 // pred_check
      _
    $region3: #{tpu_custom_call.1} parent=1 // pred_check_branch
      %11 = sbr.rel (0) target = $region5
    $region4: #{tpu_custom_call.1} parent=1 // pred_region
      %s13 = ssub.s32 384, 384
      %14 = vsyncadd [#allocation3], %s13
      %s15 = sshll.u32 [#allocation2], 4
      %s16 = int_to_ptr.vmem [resolvable:$true] %s15
      %21 = dma.hbm_to_vmem [thread:$0]  %s0, 384, %s16, [#allocation3], 128, 128, 8
    $region5: #{tpu_custom_call.1} parent=1 // pred_fallthru
      _
    // Predicated region
    $region6: #{tpu_custom_call.1} parent=1 // pred_check
      _
    $region7: #{tpu_custom_call.1} parent=1 // pred_check_branch
      %23 = sbr.rel (0) target = $region9
    $region8: #{tpu_custom_call.1} parent=1 // pred_region
      _
    $region9: #{tpu_custom_call.1} parent=1 // pred_fallthru
      _
    // Predicated region
    $region10: #{tpu_custom_call.1} parent=1 // pred_check
      _
    $region11: #{tpu_custom_call.1} parent=1 // pred_check_branch
      %25 = sbr.rel (0) target = $region13
    $region12: #{tpu_custom_call.1} parent=1 // pred_region
      _
    $region13: #{tpu_custom_call.1} parent=1 // pred_fallthru
      _
    // Predicated region
    $region14: #{tpu_custom_call.1} parent=1 // pred_check
      _
    $region15: #{tpu_custom_call.1} parent=1 // pred_check_branch
      %27 = sbr.rel (0) target = $region17
    $region16: #{tpu_custom_call.1} parent=1 // pred_region
      %28 = dma.done [#allocation3], 384
    $region17: #{tpu_custom_call.1} parent=1 // pred_fallthru
      _
    %v29 = vld [vmem:[%s1] sm:$0xff]
    %v30 = vld [vmem:[%s2] sm:$0xff]
    %32 = vset.pattern.permute.xlu0 0
    %33 = vperm.xlu0 %32, %v30
    %v34 = vpop.permute.xlu0 %33
    %v36 = vld [vmem:[#allocation2] sm:$0xff]
    %v37 = vld [vmem:[#allocation2 + $0x8] sm:$0xff]
    %v38 = vld [vmem:[#allocation2 + $0x10] sm:$0xff]
    %vm39 = vcmask 195584
    %v41 = vsel %vm39, %v29, 0
    %43 = vmatprep.subr.mxu0 0.0
    %44 = vmatpush1.msra.mxu0 0.0
    %45 = vmatprep.subr.mxu0 0.0
    %46 = vmatpush1.msra.mxu0 0.0
    %47 = vmatprep.subr.mxu0 0.0
    %48 = vmatpush1.msra.mxu0 0.0
    %49 = vmatprep.subr.mxu0 0.0
    %50 = vmatpush1.msra.mxu0 0.0
    %51 = vmatprep.subr.mxu0 0.0
    %52 = vmatpush1.msra.mxu0 0.0
    %53 = vmatprep.subr.mxu0 0.0
    %54 = vmatpush1.msra.mxu0 0.0
    %55 = vmatprep.subr.mxu0 0.0
    %56 = vmatpush1.msra.mxu0 0.0
    %57 = vmatprep.subr.mxu0 0.0
    %58 = vmatpush1.msra.mxu0 0.0
    %59 = vmatprep.subr.mxu0 0.0
    %60 = vmatpush1.msra.mxu0 0.0
    %61 = vmatprep.subr.mxu0 0.0
    %62 = vmatpush1.msra.mxu0 0.0
    %63 = vmatprep.subr.mxu0 0.0
    %64 = vmatpush1.msra.mxu0 0.0
    %65 = vmatprep.subr.mxu0 0.0
    %66 = vmatpush1.msra.mxu0 0.0
    %67 = vmatprep.subr.mxu0 0.0
    %68 = vmatpush1.msra.mxu0 0.0
    %69 = vmatprep.subr.mxu0 0.0
    %70 = vmatpush1.msra.mxu0 %v38
    %71 = vmatprep.subr.mxu0 0.0
    %72 = vmatpush1.msra.mxu0 %v37
    %73 = vmatprep.subr.mxu0 0.0
    %74 = vmatpush1.msra.mxu0 %v36
    %75 = vmatprep.subr.mxu0 0.0
    %76 = vmatpush2.msra.mxu0 0.0
    %77 = vmatprep.subr.mxu0 0.0
    %78 = vmatpush2.msra.mxu0 0.0
    %79 = vmatprep.subr.mxu0 0.0
    %80 = vmatpush2.msra.mxu0 0.0
    %81 = vmatprep.subr.mxu0 0.0
    %82 = vmatpush2.msra.mxu0 0.0
    %83 = vmatprep.subr.mxu0 0.0
    %84 = vmatpush2.msra.mxu0 0.0
    %85 = vmatprep.subr.mxu0 0.0
    %86 = vmatpush2.msra.mxu0 0.0
    %87 = vmatprep.subr.mxu0 0.0
    %88 = vmatpush2.msra.mxu0 0.0
    %89 = vmatprep.subr.mxu0 0.0
    %90 = vmatpush2.msra.mxu0 0.0
    %91 = vmatprep.subr.mxu0 0.0
    %92 = vmatpush2.msra.mxu0 0.0
    %93 = vmatprep.subr.mxu0 0.0
    %94 = vmatpush2.msra.mxu0 0.0
    %95 = vmatprep.subr.mxu0 0.0
    %96 = vmatpush2.msra.mxu0 0.0
    %97 = vmatprep.subr.mxu0 0.0
    %98 = vmatpush2.msra.mxu0 0.0
    %99 = vmatprep.subr.mxu0 0.0
    %100 = vmatpush2.msra.mxu0 0.0
    %101 = vmatprep.subr.mxu0 0.0
    %102 = vmatpush2.msra.mxu0 0.0
    %103 = vmatprep.subr.mxu0 0.0
    %104 = vmatpush2.msra.mxu0 0.0
    %105 = vmatprep.subr.mxu0 0.0
    %106 = vmatpush2.msra.mxu0 0.0
    %107 = vmatprep.mubr.f32.mxu0 0.0
    %108 = vmatmul.mubr.f32.gmra.mxu0 %v41
    %v109 = vpop.f32.mrf.mxu0
    %v110 = vadd.f32 %v34, %v109
    %v111 = vpop.f32.mrf.mxu0
    %112 = vdwg.mxu0
    %113 = vmatprep.subr.mxu0 0.0
    %114 = vmatpush1.msra.mxu0 0.0
    %115 = vmatprep.subr.mxu0 0.0
    %116 = vmatpush1.msra.mxu0 0.0
    %117 = vmatprep.subr.mxu0 0.0
    %118 = vmatpush1.msra.mxu0 0.0
    %119 = vmatprep.subr.mxu0 0.0
    %120 = vmatpush1.msra.mxu0 0.0
    %121 = vmatprep.subr.mxu0 0.0
    %122 = vmatpush1.msra.mxu0 0.0
    %123 = vmatprep.subr.mxu0 0.0
    %124 = vmatpush1.msra.mxu0 0.0
    %125 = vmatprep.subr.mxu0 0.0
    %126 = vmatpush1.msra.mxu0 0.0
    %127 = vmatprep.subr.mxu0 0.0
    %128 = vmatpush1.msra.mxu0 0.0
    %129 = vmatprep.subr.mxu0 0.0
    %130 = vmatpush1.msra.mxu0 0.0
    %131 = vmatprep.subr.mxu0 0.0
    %132 = vmatpush1.msra.mxu0 0.0
    %133 = vmatprep.subr.mxu0 0.0
    %134 = vmatpush1.msra.mxu0 0.0
    %135 = vmatprep.subr.mxu0 0.0
    %136 = vmatpush1.msra.mxu0 0.0
    %137 = vmatprep.subr.mxu0 0.0
    %138 = vmatpush1.msra.mxu0 0.0
    %139 = vmatprep.subr.mxu0 0.0
    %140 = vmatpush1.msra.mxu0 %v110
    %141 = vmatprep.subr.mxu0 0.0
    %142 = vmatpush1.msra.mxu0 %v38
    %143 = vmatprep.subr.mxu0 0.0
    %144 = vmatpush1.msra.mxu0 %v37
    %145 = vmatprep.subr.mxu0 0.0
    %146 = vmatpush2.msra.mxu0 0.0
    %147 = vmatprep.subr.mxu0 0.0
    %148 = vmatpush2.msra.mxu0 0.0
    %149 = vmatprep.subr.mxu0 0.0
    %150 = vmatpush2.msra.mxu0 0.0
    %151 = vmatprep.subr.mxu0 0.0
    %152 = vmatpush2.msra.mxu0 0.0
    %153 = vmatprep.subr.mxu0 0.0
    %154 = vmatpush2.msra.mxu0 0.0
    %155 = vmatprep.subr.mxu0 0.0
    %156 = vmatpush2.msra.mxu0 0.0
    %157 = vmatprep.subr.mxu0 0.0
    %158 = vmatpush2.msra.mxu0 0.0
    %159 = vmatprep.subr.mxu0 0.0
    %160 = vmatpush2.msra.mxu0 0.0
    %161 = vmatprep.subr.mxu0 0.0
    %162 = vmatpush2.msra.mxu0 0.0
    %163 = vmatprep.subr.mxu0 0.0
    %164 = vmatpush2.msra.mxu0 0.0
    %165 = vmatprep.subr.mxu0 0.0
    %166 = vmatpush2.msra.mxu0 0.0
    %167 = vmatprep.subr.mxu0 0.0
    %168 = vmatpush2.msra.mxu0 0.0
    %169 = vmatprep.subr.mxu0 0.0
    %170 = vmatpush2.msra.mxu0 0.0
    %171 = vmatprep.subr.mxu0 0.0
    %172 = vmatpush2.msra.mxu0 0.0
    %173 = vmatprep.subr.mxu0 0.0
    %174 = vmatpush2.msra.mxu0 0.0
    %175 = vmatprep.subr.mxu0 0.0
    %176 = vmatpush2.msra.mxu0 0.0
    %177 = vmatprep.mubr.f32.mxu0 0.0
    %178 = vmatmul.mubr.f32.gmra.mxu0 %v41
    %v179 = vpop.f32.mrf.mxu0
    %v180 = vadd.f32 %v34, %v179
    %v181 = vpop.f32.mrf.mxu0
    %182 = vdwg.mxu0
    %183 = vmatprep.subr.mxu0 0.0
    %184 = vmatpush1.msra.mxu0 0.0
    %185 = vmatprep.subr.mxu0 0.0
    %186 = vmatpush1.msra.mxu0 0.0
    %187 = vmatprep.subr.mxu0 0.0
    %188 = vmatpush1.msra.mxu0 0.0
    %189 = vmatprep.subr.mxu0 0.0
    %190 = vmatpush1.msra.mxu0 0.0
    %191 = vmatprep.subr.mxu0 0.0
    %192 = vmatpush1.msra.mxu0 0.0
    %193 = vmatprep.subr.mxu0 0.0
    %194 = vmatpush1.msra.mxu0 0.0
    %195 = vmatprep.subr.mxu0 0.0
    %196 = vmatpush1.msra.mxu0 0.0
    %197 = vmatprep.subr.mxu0 0.0
    %198 = vmatpush1.msra.mxu0 0.0
    %199 = vmatprep.subr.mxu0 0.0
    %200 = vmatpush1.msra.mxu0 0.0
    %201 = vmatprep.subr.mxu0 0.0
    %202 = vmatpush1.msra.mxu0 0.0
    %203 = vmatprep.subr.mxu0 0.0
    %204 = vmatpush1.msra.mxu0 0.0
    %205 = vmatprep.subr.mxu0 0.0
    %206 = vmatpush1.msra.mxu0 0.0
    %207 = vmatprep.subr.mxu0 0.0
    %208 = vmatpush1.msra.mxu0 0.0
    %209 = vmatprep.subr.mxu0 0.0
    %210 = vmatpush1.msra.mxu0 %v180
    %211 = vmatprep.subr.mxu0 0.0
    %212 = vmatpush1.msra.mxu0 %v110
    %213 = vmatprep.subr.mxu0 0.0
    %214 = vmatpush1.msra.mxu0 %v38
    %215 = vmatprep.subr.mxu0 0.0
    %216 = vmatpush2.msra.mxu0 0.0
    %217 = vmatprep.subr.mxu0 0.0
    %218 = vmatpush2.msra.mxu0 0.0
    %219 = vmatprep.subr.mxu0 0.0
    %220 = vmatpush2.msra.mxu0 0.0
    %221 = vmatprep.subr.mxu0 0.0
    %222 = vmatpush2.msra.mxu0 0.0
    %223 = vmatprep.subr.mxu0 0.0
    %224 = vmatpush2.msra.mxu0 0.0
    %225 = vmatprep.subr.mxu0 0.0
    %226 = vmatpush2.msra.mxu0 0.0
    %227 = vmatprep.subr.mxu0 0.0
    %228 = vmatpush2.msra.mxu0 0.0
    %229 = vmatprep.subr.mxu0 0.0
    %230 = vmatpush2.msra.mxu0 0.0
    %231 = vmatprep.subr.mxu0 0.0
    %232 = vmatpush2.msra.mxu0 0.0
    %233 = vmatprep.subr.mxu0 0.0
    %234 = vmatpush2.msra.mxu0 0.0
    %235 = vmatprep.subr.mxu0 0.0
    %236 = vmatpush2.msra.mxu0 0.0
    %237 = vmatprep.subr.mxu0 0.0
    %238 = vmatpush2.msra.mxu0 0.0
    %239 = vmatprep.subr.mxu0 0.0
    %240 = vmatpush2.msra.mxu0 0.0
    %241 = vmatprep.subr.mxu0 0.0
    %242 = vmatpush2.msra.mxu0 0.0
    %243 = vmatprep.subr.mxu0 0.0
    %244 = vmatpush2.msra.mxu0 0.0
    %245 = vmatprep.subr.mxu0 0.0
    %246 = vmatpush2.msra.mxu0 0.0
    %247 = vmatprep.mubr.f32.mxu0 0.0
    %248 = vmatmul.mubr.f32.gmra.mxu0 %v41
    %v249 = vpop.f32.mrf.mxu0
    %v250 = vadd.f32 %v34, %v249
    %v251 = vpop.f32.mrf.mxu0
    %252 = vdwg.mxu0
    %253 = vmatprep.subr.mxu0 0.0
    %254 = vmatpush1.msra.mxu0 0.0
    %255 = vmatprep.subr.mxu0 0.0
    %256 = vmatpush1.msra.mxu0 0.0
    %257 = vmatprep.subr.mxu0 0.0
    %258 = vmatpush1.msra.mxu0 0.0
    %259 = vmatprep.subr.mxu0 0.0
    %260 = vmatpush1.msra.mxu0 0.0
    %261 = vmatprep.subr.mxu0 0.0
    %262 = vmatpush1.msra.mxu0 0.0
    %263 = vmatprep.subr.mxu0 0.0
    %264 = vmatpush1.msra.mxu0 0.0
    %265 = vmatprep.subr.mxu0 0.0
    %266 = vmatpush1.msra.mxu0 0.0
    %267 = vmatprep.subr.mxu0 0.0
    %268 = vmatpush1.msra.mxu0 0.0
    %269 = vmatprep.subr.mxu0 0.0
    %270 = vmatpush1.msra.mxu0 0.0
    %271 = vmatprep.subr.mxu0 0.0
    %272 = vmatpush1.msra.mxu0 0.0
    %273 = vmatprep.subr.mxu0 0.0
    %274 = vmatpush1.msra.mxu0 0.0
    %275 = vmatprep.subr.mxu0 0.0
    %276 = vmatpush1.msra.mxu0 0.0
    %277 = vmatprep.subr.mxu0 0.0
    %278 = vmatpush1.msra.mxu0 0.0
    %279 = vmatprep.subr.mxu0 0.0
    %280 = vmatpush1.msra.mxu0 %v250
    %281 = vmatprep.subr.mxu0 0.0
    %282 = vmatpush1.msra.mxu0 %v180
    %283 = vmatprep.subr.mxu0 0.0
    %284 = vmatpush1.msra.mxu0 %v110
    %285 = vmatprep.subr.mxu0 0.0
    %286 = vmatpush2.msra.mxu0 0.0
    %287 = vmatprep.subr.mxu0 0.0
    %288 = vmatpush2.msra.mxu0 0.0
    %289 = vmatprep.subr.mxu0 0.0
    %290 = vmatpush2.msra.mxu0 0.0
    %291 = vmatprep.subr.mxu0 0.0
    %292 = vmatpush2.msra.mxu0 0.0
    %293 = vmatprep.subr.mxu0 0.0
    %294 = vmatpush2.msra.mxu0 0.0
    %295 = vmatprep.subr.mxu0 0.0
    %296 = vmatpush2.msra.mxu0 0.0
    %297 = vmatprep.subr.mxu0 0.0
    %298 = vmatpush2.msra.mxu0 0.0
    %299 = vmatprep.subr.mxu0 0.0
    %300 = vmatpush2.msra.mxu0 0.0
    %301 = vmatprep.subr.mxu0 0.0
    %302 = vmatpush2.msra.mxu0 0.0
    %303 = vmatprep.subr.mxu0 0.0
    %304 = vmatpush2.msra.mxu0 0.0
    %305 = vmatprep.subr.mxu0 0.0
    %306 = vmatpush2.msra.mxu0 0.0
    %307 = vmatprep.subr.mxu0 0.0
    %308 = vmatpush2.msra.mxu0 0.0
    %309 = vmatprep.subr.mxu0 0.0
    %310 = vmatpush2.msra.mxu0 0.0
    %311 = vmatprep.subr.mxu0 0.0
    %312 = vmatpush2.msra.mxu0 0.0
    %313 = vmatprep.subr.mxu0 0.0
    %314 = vmatpush2.msra.mxu0 0.0
    %315 = vmatprep.subr.mxu0 0.0
    %316 = vmatpush2.msra.mxu0 0.0
    %317 = vmatprep.mubr.f32.mxu0 0.0
    %318 = vmatmul.mubr.f32.gmra.mxu0 %v41
    %v319 = vpop.f32.mrf.mxu0
    %v320 = vadd.f32 %v34, %v319
    %v321 = vpop.f32.mrf.mxu0
    %322 = vdwg.mxu0
    %323 = vst [vmem:[#allocation5] sm:$0xff] %v110
    %324 = vst [vmem:[#allocation5 + $0x8] sm:$0xff] %v180
    %325 = vst [vmem:[#allocation5 + $0x10] sm:$0xff] %v250
    %326 = vst [vmem:[#allocation5 + $0x18] sm:$0xff] %v320
    // Predicated region
    $region18: #{tpu_custom_call.1} parent=1 // pred_check
      _
    $region19: #{tpu_custom_call.1} parent=1 // pred_check_branch
      %328 = sbr.rel (0) target = $region21
    $region20: #{tpu_custom_call.1} parent=1 // pred_region
      %s330 = ssub.s32 512, 512
      %331 = vsyncadd [#allocation4], %s330
      %s332 = sshll.u32 [#allocation5], 4
      %s333 = int_to_ptr.vmem [resolvable:$true] %s332
      %338 = dma.vmem_to_hbm [thread:$0]  %s333, 512, %s3, [#allocation4], 128, 128, 8
    $region21: #{tpu_custom_call.1} parent=1 // pred_fallthru
      _
    // Predicated region
    $region22: #{tpu_custom_call.1} parent=1 // pred_check
      _
    $region23: #{tpu_custom_call.1} parent=1 // pred_check_branch
      %340 = sbr.rel (0) target = $region25
    $region24: #{tpu_custom_call.1} parent=1 // pred_region
      %341 = dma.done [#allocation4], 512
    $region25: #{tpu_custom_call.1} parent=1 // pred_fallthru
      _
    %342 = vsyncpa [#allocation3], 1
    %343 = vsyncpa [#allocation4], 1

</llo_original>
